<compile_context>
chip_gen: v7x
topology: tpu7x:2x2x1
jax: 0.10.0
libtpu: 0.0.40
codegen_flags: <defaults>
</compile_context>

<pallas_src>
import jax
import jax.numpy as jnp
from jax.experimental import pallas as pl
from jax.experimental.pallas import tpu as pltpu


# ------------------------------- kernel -------------------------------------

def channel_gate_kernel(x_ref, w1t_ref, b1_ref, w2t_ref, b2_ref, o_ref):
    # x_ref/o_ref: (Bt, C, HW) activation tile (native dtype)
    # w1t_ref: (C, Cr)   b1_ref: (1, Cr)
    # w2t_ref: (Cr, C)   b2_ref: (1, C)
    bt, c, hw = x_ref.shape

    # --- Global avg / max pool over the spatial (lane) axis.
    #     The block is consumed here and NOT kept live across the MLP; only the
    #     (Bt, C) f32 statistics survive, so no multi-MiB value needs vregs.
    xs = x_ref[...]                                            # read #1 (pools)
    ssum = jnp.sum(xs, axis=2, dtype=jnp.float32)              # f32 accumulation
    smax = jnp.max(xs, axis=2).astype(jnp.float32)             # (Bt, C)
    avg = ssum * jnp.float32(1.0 / hw)                         # (Bt, C)

    # --- Shared MLP on the packed (avg; max) stats.  Pad each half to a
    #     multiple of 8 sublane rows so the concat and the row slices below
    #     stay tile-aligned (no XLU sublane-shift copies, no ragged MXU rows).
    bt_pad = ((bt + 7) // 8) * 8
    if bt_pad != bt:
        z = jnp.zeros((bt_pad - bt, c), jnp.float32)
        avg = jnp.concatenate([avg, z], axis=0)
        smax = jnp.concatenate([smax, z], axis=0)
    p = jnp.concatenate([avg, smax], axis=0)                   # (2*Bt_pad, C)

    h = jnp.maximum(
        jnp.dot(p, w1t_ref[...], preferred_element_type=jnp.float32)
        + b1_ref[...].astype(jnp.float32), 0.0)                # (2*Bt_pad, Cr)
    a = (jnp.dot(h, w2t_ref[...], preferred_element_type=jnp.float32)
         + b2_ref[...].astype(jnp.float32))                    # (2*Bt_pad, C)

    # Aligned slices: avg half starts at row 0, max half at row bt_pad (mult 8).
    scale = jax.nn.sigmoid(a[:bt] + a[bt_pad:bt_pad + bt])     # (Bt, C) f32
    scale = scale.astype(o_ref.dtype)[:, :, None]              # bcast over HW

    # --- Rescale: re-read the block from VMEM (vld slots are plentiful) and
    #     multiply in the input dtype -> no widened f32 block, no spills.
    o_ref[...] = (x_ref[...] * scale).astype(o_ref.dtype)      # read #2 (store)


# ---------------------------- sizing helpers ---------------------------------

def _round_up(x, m):
    return ((x + m - 1) // m) * m


def _sublane_multiple(dtype):
    itemsize = jnp.dtype(dtype).itemsize
    return 8 * max(1, 4 // itemsize)          # f32->8, bf16->16, int8/fp8->32


def _padded_tile_bytes(rows, cols, dtype):
    """Padded VMEM bytes of a 2-D tile (sublane x lane padding)."""
    itemsize = jnp.dtype(dtype).itemsize
    return (_round_up(max(rows, 1), _sublane_multiple(dtype))
            * _round_up(max(cols, 1), 128) * itemsize)


def _vmem_capacity_bytes():
    """Best-effort physical VMEM capacity of the attached TPU generation."""
    try:
        cap = int(getattr(pltpu.get_tpu_info(), "vmem_capacity_bytes", 0))
        if cap > 0:
            return cap
    except Exception:
        pass
    try:
        kind = jax.devices()[0].device_kind.lower()
    except Exception:
        kind = ""
    if "v2" in kind or "v3" in kind:
        return 16 << 20
    if "v4" in kind or "v5" in kind or "v6" in kind:
        return 128 << 20
    return 64 << 20                            # v7x-like / unknown: conservative


def _pick_batch_tile(B, per_batch_padded_bytes, target_block_bytes):
    """Largest divisor of B such that the padded block fits the target budget
    while keeping >=4 grid steps (>=2 per TensorCore on 2-TC parts) when the
    batch allows it, preferring an even step count."""
    budget_bt = max(1, int(target_block_bytes // max(per_batch_padded_bytes, 1)))
    if B >= 4:
        budget_bt = min(budget_bt, B // 4)
    elif B > 1:
        budget_bt = min(budget_bt, B // 2)     # at least 2 steps for pipelining
    budget_bt = max(1, min(budget_bt, B))
    divisors = [d for d in range(1, B + 1) if B % d == 0 and d <= budget_bt]
    even = [d for d in divisors if (B // d) % 2 == 0]
    return max(even) if even else max(divisors)


# ------------------------------- wrapper -------------------------------------

def channel_gate(x, w1, b1, w2, b2, *, target_block_bytes=None):
    """x: (B, C, H, W) NCHW.  w1: (Cr, C), b1: (Cr,), w2: (C, Cr), b2: (C,).
    nn.Linear semantics: y = p @ W.T + b for row vectors p."""
    B, C, H, W = x.shape
    HW = H * W
    Cr = w1.shape[0]

    x2 = x.reshape(B, C, HW)
    w1t = jnp.transpose(w1)                    # (C, Cr)
    w2t = jnp.transpose(w2)                    # (Cr, C)
    b1r = b1.reshape(1, Cr)                    # lane-dense bias rows
    b2r = b2.reshape(1, C)

    itemsize = jnp.dtype(x.dtype).itemsize
    vmem_cap = _vmem_capacity_bytes()
    big_vmem = vmem_cap >= (100 << 20)         # v5e / v6e (128 MiB) vs v7x (64 MiB)

    if target_block_bytes is None:
        target_block_bytes = (12 << 20) if big_vmem else (5 << 20)
    soft_cap = (96 << 20) if big_vmem else (48 << 20)

    # Padded (real VMEM) footprint of one image's (C, HW) slab.
    per_batch_padded = (_round_up(C, _sublane_multiple(x.dtype))
                        * _round_up(HW, 128) * itemsize)

    bt = _pick_batch_tile(B, per_batch_padded, target_block_bytes)
    grid = (B // bt,)
    block_padded = bt * per_batch_padded

    weights_padded = 2 * (_padded_tile_bytes(C, Cr, w1.dtype)
                          + _padded_tile_bytes(1, Cr, b1.dtype)
                          + _padded_tile_bytes(Cr, C, w2.dtype)
                          + _padded_tile_bytes(1, C, b2.dtype))

    # 2x input + 2x output buffers (double-buffered) + weights + Mosaic scratch.
    needed = 4 * block_padded + weights_padded + (4 << 20)
    phys = max(vmem_cap - (8 << 20), 16 << 20)
    soft = min(soft_cap, phys)
    if needed <= soft:
        vmem_limit = max(needed, min(32 << 20, soft))
    else:
        # Single image bigger than the per-generation block budget: raise the
        # limit toward physical VMEM rather than failing outright.
        # TODO(synk): add an HW-chunked two-pass path (sum/max accumulators +
        # rescale pass) for layers whose single image exceeds even this.
        vmem_limit = min(needed, phys)

    bytes_accessed = (2 * B * C * HW * itemsize
                      + 2 * C * Cr * jnp.dtype(w1.dtype).itemsize
                      + (C + Cr) * jnp.dtype(b1.dtype).itemsize)
    cost = pl.CostEstimate(
        flops=int(4 * B * (C * Cr + Cr * C)),   # two matmuls on (2B, C) stats
        transcendentals=int(B * C),             # sigmoid
        bytes_accessed=int(bytes_accessed))

    out = pl.pallas_call(
        channel_gate_kernel,
        out_shape=jax.ShapeDtypeStruct((B, C, HW), x.dtype),
        grid_spec=pltpu.PrefetchScalarGridSpec(
            num_scalar_prefetch=0,
            grid=grid,
            in_specs=[
                pl.BlockSpec((bt, C, HW), lambda b: (b, 0, 0)),  # x tile
                pl.BlockSpec((C, Cr), lambda b: (0, 0)),         # W1^T (full)
                pl.BlockSpec((1, Cr), lambda b: (0, 0)),         # b1 row
                pl.BlockSpec((Cr, C), lambda b: (0, 0)),         # W2^T (full)
                pl.BlockSpec((1, C), lambda b: (0, 0)),          # b2 row
            ],
            out_specs=pl.BlockSpec((bt, C, HW), lambda b: (b, 0, 0)),
        ),
        compiler_params=pltpu.CompilerParams(
            dimension_semantics=("parallel",),
            vmem_limit_bytes=int(vmem_limit)),
        cost_estimate=cost,
    )(x2, w1t, b1r, w2t, b2r)

    return out.reshape(B, C, H, W)


# ------------------------------ reference ------------------------------------

def channel_gate_ref(x, w1, b1, w2, b2):
    """Pure-JAX reference mirroring the PyTorch forward."""
    avg = jnp.mean(x, axis=(2, 3))        # (B, C)
    mx = jnp.max(x, axis=(2, 3))          # (B, C)

    def mlp(p):
        h = jnp.maximum(p @ w1.T + b1, 0.0)
        return h @ w2.T + b2

    scale = jax.nn.sigmoid(mlp(avg) + mlp(mx))[:, :, None, None]
    return x * scale


def _make_params(key, C, Cr, dtype=jnp.float32):
    k1, k2, k3, k4 = jax.random.split(key, 4)
    w1 = jax.random.normal(k1, (Cr, C), dtype) * 0.1
    b1 = jax.random.normal(k2, (Cr,), dtype) * 0.1
    w2 = jax.random.normal(k3, (C, Cr), dtype) * 0.1
    b2 = jax.random.normal(k4, (C,), dtype) * 0.1
    return w1, b1, w2, b2


if __name__ == "__main__":
    # Test 1: lane-aligned spatial extent (HW = 256), C=64, reduction=16.
    B, C, H, W = 2, 64, 16, 16
    Cr = C // 16
    kx, kp = jax.random.split(jax.random.PRNGKey(0))
    x = jax.random.normal(kx, (B, C, H, W), dtype=jnp.float32)
    w1, b1, w2, b2 = _make_params(kp, C, Cr)

    out = jax.block_until_ready(channel_gate(x, w1, b1, w2, b2))
    ref = channel_gate_ref(x, w1, b1, w2, b2)
    assert out.shape == (B, C, H, W)
    assert jnp.allclose(out, ref, atol=1e-5, rtol=1e-5), "mismatch (aligned HW)"

    # Test 2: non-lane-aligned spatial extent (7x7 -> HW=49) with all-negative
    # inputs -- catches any inclusion of padded lanes in the max/avg pools.
    B2, C2, H2, W2 = 2, 32, 7, 7
    Cr2 = C2 // 8
    kx2, kp2 = jax.random.split(jax.random.PRNGKey(1))
    x2 = -jnp.abs(jax.random.normal(kx2, (B2, C2, H2, W2), jnp.float32)) - 0.5
    w1b, b1b, w2b, b2b = _make_params(kp2, C2, Cr2)

    out2 = jax.block_until_ready(channel_gate(x2, w1b, b1b, w2b, b2b))
    ref2 = channel_gate_ref(x2, w1b, b1b, w2b, b2b)
    assert jnp.allclose(out2, ref2, atol=1e-5, rtol=1e-5), "mismatch (unaligned HW)"

    # Test 3: larger batch exercising the multi-step grid / batch tiling path.
    B3, C3, H3, W3 = 8, 64, 8, 8
    Cr3 = C3 // 16
    kx3, kp3 = jax.random.split(jax.random.PRNGKey(2))
    x3 = jax.random.normal(kx3, (B3, C3, H3, W3), jnp.float32)
    w1c, b1c, w2c, b2c = _make_params(kp3, C3, Cr3)

    out3 = jax.block_until_ready(channel_gate(x3, w1c, b1c, w2c, b2c))
    ref3 = channel_gate_ref(x3, w1c, b1c, w2c, b2c)
    assert jnp.allclose(out3, ref3, atol=1e-5, rtol=1e-5), "mismatch (batched)"

    print("KERNEL_OK")
</pallas_src>

<mosaic_0001>
module attributes {stable_mosaic.version = 11 : i64} {
  func.func @channel_gate_kernel(%arg0: i32, %arg1: memref<1x64x256xf32, #tpu.memory_space<vmem>>, %arg2: memref<64x4xf32, #tpu.memory_space<vmem>>, %arg3: memref<1x4xf32, #tpu.memory_space<vmem>>, %arg4: memref<4x64xf32, #tpu.memory_space<vmem>>, %arg5: memref<1x64xf32, #tpu.memory_space<vmem>>, %arg6: memref<1x64x256xf32, #tpu.memory_space<vmem>>) attributes {dimension_semantics = [#tpu.dimension_semantics<parallel>], iteration_bounds = array<i64: 2>, scalar_prefetch = 0 : i64, scratch_operands = 0 : i64, tpu.core_type = #tpu.core_type<tc>, window_params = [{transform_indices = @transform_0, window_bounds = array<i64: 1, 64, 256>}, {pipeline_mode = #tpu.pipeline_mode<synchronous>, transform_indices = @transform_1, window_bounds = array<i64: 64, 4>}, {pipeline_mode = #tpu.pipeline_mode<synchronous>, transform_indices = @transform_2, window_bounds = array<i64: 1, 4>}, {pipeline_mode = #tpu.pipeline_mode<synchronous>, transform_indices = @transform_3, window_bounds = array<i64: 4, 64>}, {pipeline_mode = #tpu.pipeline_mode<synchronous>, transform_indices = @transform_4, window_bounds = array<i64: 1, 64>}, {transform_indices = @transform_5, window_bounds = array<i64: 1, 64, 256>}]} {
    %c0 = arith.constant 0 : index
    %c0_0 = arith.constant 0 : index
    %c0_1 = arith.constant 0 : index
    %0 = vector.load %arg1[%c0, %c0_0, %c0_1] : memref<1x64x256xf32, #tpu.memory_space<vmem>>, vector<1x64x256xf32>
    %cst = arith.constant dense<0.000000e+00> : vector<1x64xf32>
    %1 = vector.multi_reduction <add>, %0, %cst [2] : vector<1x64x256xf32> to vector<1x64xf32>
    %cst_2 = arith.constant dense<0xFF800000> : vector<1x64xf32>
    %2 = vector.multi_reduction <maximumf>, %0, %cst_2 [2] : vector<1x64x256xf32> to vector<1x64xf32>
    %cst_3 = arith.constant 3.906250e-03 : f32
    %3 = vector.broadcast %cst_3 : f32 to vector<1x64xf32>
    %4 = arith.mulf %1, %3 : vector<1x64xf32>
    %cst_4 = arith.constant 0.000000e+00 : f32
    %5 = vector.broadcast %cst_4 : f32 to vector<7x64xf32>
    %6 = tpu.concatenate %4, %5 in 0 : vector<1x64xf32>, vector<7x64xf32> -> vector<8x64xf32>
    %7 = tpu.concatenate %2, %5 in 0 : vector<1x64xf32>, vector<7x64xf32> -> vector<8x64xf32>
    %8 = tpu.concatenate %6, %7 in 0 : vector<8x64xf32>, vector<8x64xf32> -> vector<16x64xf32>
    %c0_5 = arith.constant 0 : index
    %c0_6 = arith.constant 0 : index
    %9 = vector.load %arg2[%c0_5, %c0_6] : memref<64x4xf32, #tpu.memory_space<vmem>>, vector<64x4xf32>
    %cst_7 = arith.constant dense<0.000000e+00> : vector<16x4xf32>
    %10 = tpu.matmul %8, %9, %cst_7 {dimension_numbers = #tpu.dot_dimension_numbers<[1], [0], [0], [1], [0, 0, 1, 1], [], []>} : vector<16x64xf32>, vector<64x4xf32>, vector<16x4xf32> -> vector<16x4xf32>
    %c0_8 = arith.constant 0 : index
    %c0_9 = arith.constant 0 : index
    %11 = vector.load %arg3[%c0_8, %c0_9] : memref<1x4xf32, #tpu.memory_space<vmem>>, vector<1x4xf32>
    %12 = vector.broadcast %11 : vector<1x4xf32> to vector<16x4xf32>
    %13 = arith.addf %10, %12 : vector<16x4xf32>
    %cst_10 = arith.constant 0.000000e+00 : f32
    %14 = vector.broadcast %cst_10 : f32 to vector<16x4xf32>
    %15 = arith.maximumf %13, %14 : vector<16x4xf32>
    %c0_11 = arith.constant 0 : index
    %c0_12 = arith.constant 0 : index
    %16 = vector.load %arg4[%c0_11, %c0_12] : memref<4x64xf32, #tpu.memory_space<vmem>>, vector<4x64xf32>
    %cst_13 = arith.constant dense<0.000000e+00> : vector<16x64xf32>
    %17 = tpu.matmul %15, %16, %cst_13 {dimension_numbers = #tpu.dot_dimension_numbers<[1], [0], [0], [1], [0, 0, 1, 1], [], []>} : vector<16x4xf32>, vector<4x64xf32>, vector<16x64xf32> -> vector<16x64xf32>
    %c0_14 = arith.constant 0 : index
    %c0_15 = arith.constant 0 : index
    %18 = vector.load %arg5[%c0_14, %c0_15] : memref<1x64xf32, #tpu.memory_space<vmem>>, vector<1x64xf32>
    %19 = vector.broadcast %18 : vector<1x64xf32> to vector<16x64xf32>
    %20 = arith.addf %17, %19 : vector<16x64xf32>
    %21 = vector.extract_strided_slice %20 {offsets = [0, 0], sizes = [1, 64], strides = [1, 1]} : vector<16x64xf32> to vector<1x64xf32>
    %22 = vector.extract_strided_slice %20 {offsets = [8, 0], sizes = [1, 64], strides = [1, 1]} : vector<16x64xf32> to vector<1x64xf32>
    %23 = arith.addf %21, %22 : vector<1x64xf32>
    %24 = arith.negf %23 : vector<1x64xf32>
    %25 = math.exp %24 : vector<1x64xf32>
    %cst_16 = arith.constant 1.000000e+00 : f32
    %26 = vector.broadcast %cst_16 : f32 to vector<1x64xf32>
    %27 = arith.addf %26, %25 : vector<1x64xf32>
    %28 = arith.divf %26, %27 : vector<1x64xf32>
    %29 = vector.shape_cast %28 : vector<1x64xf32> to vector<1x64x1xf32>
    %c0_17 = arith.constant 0 : index
    %c0_18 = arith.constant 0 : index
    %c0_19 = arith.constant 0 : index
    %30 = vector.load %arg1[%c0_17, %c0_18, %c0_19] : memref<1x64x256xf32, #tpu.memory_space<vmem>>, vector<1x64x256xf32>
    %31 = vector.broadcast %29 : vector<1x64x1xf32> to vector<1x64x256xf32>
    %32 = arith.mulf %30, %31 : vector<1x64x256xf32>
    %c0_20 = arith.constant 0 : index
    %c0_21 = arith.constant 0 : index
    %c0_22 = arith.constant 0 : index
    %33 = vector.load %arg6[%c0_20, %c0_21, %c0_22] : memref<1x64x256xf32, #tpu.memory_space<vmem>>, vector<1x64x256xf32>
    tpu.vector_store %arg6[%c0_20, %c0_21, %c0_22], %32 {strides = array<i32>} : memref<1x64x256xf32, #tpu.memory_space<vmem>>, vector<1x64x256xf32>,
    return
  }
  func.func @transform_0(%arg0: i32) -> (i32, i32, i32) {
    %c0_i32 = arith.constant 0 : i32
    %c0_i32_0 = arith.constant 0 : i32
    %c0_i32_1 = arith.constant 0 : i32
    return %arg0, %c0_i32, %c0_i32_0 : i32, i32, i32
  }
  func.func @transform_1(%arg0: i32) -> (i32, i32) {
    %c0_i32 = arith.constant 0 : i32
    %c0_i32_0 = arith.constant 0 : i32
    %c0_i32_1 = arith.constant 0 : i32
    return %c0_i32, %c0_i32_0 : i32, i32
  }
  func.func @transform_2(%arg0: i32) -> (i32, i32) {
    %c0_i32 = arith.constant 0 : i32
    %c0_i32_0 = arith.constant 0 : i32
    %c0_i32_1 = arith.constant 0 : i32
    return %c0_i32, %c0_i32_0 : i32, i32
  }
  func.func @transform_3(%arg0: i32) -> (i32, i32) {
    %c0_i32 = arith.constant 0 : i32
    %c0_i32_0 = arith.constant 0 : i32
    %c0_i32_1 = arith.constant 0 : i32
    return %c0_i32, %c0_i32_0 : i32, i32
  }
  func.func @transform_4(%arg0: i32) -> (i32, i32) {
    %c0_i32 = arith.constant 0 : i32
    %c0_i32_0 = arith.constant 0 : i32
    %c0_i32_1 = arith.constant 0 : i32
    return %c0_i32, %c0_i32_0 : i32, i32
  }
  func.func @transform_5(%arg0: i32) -> (i32, i32, i32) {
    %c0_i32 = arith.constant 0 : i32
    %c0_i32_0 = arith.constant 0 : i32
    %c0_i32_1 = arith.constant 0 : i32
    return %arg0, %c0_i32, %c0_i32_0 : i32, i32, i32
  }
}

</mosaic_0001>

<llo_original>
// kernel: tpu_custom_call.1
$region0: #{tpu_custom_call.1}
  #allocation0 [shape = 'u32[]', space=smem, size = 0x4, offset = 0x4, fixed_abs, tag = 'smem constant byte address 0x4 - core index']
  #allocation1 [shape = 'u32[144,128]{1,0:T(1,128)}', space=vmem, size = 0x12000, scoped, tag = 'internal scratch']
  %s0 = inlined_call_operand.hbm [shape: f32[2,64,256], index: 0, kind: input, shape index: {}]
  %s1 = inlined_call_operand.vmem [shape: f32[64,4], index: 1, kind: input, shape index: {}]
  %s2 = inlined_call_operand.vmem [shape: f32[1,4], index: 2, kind: input, shape index: {}]
  %s3 = inlined_call_operand.vmem [shape: f32[4,64], index: 3, kind: input, shape index: {}]
  %s4 = inlined_call_operand.vmem [shape: f32[1,64], index: 4, kind: input, shape index: {}]
  %s5 = inlined_call_operand.hbm [shape: f32[2,64,256], index: 5, kind: output, shape index: {}]
  %s6 = sld [smem:[#allocation0]]
  $region57: #{tpu_custom_call.1} parent=0
    _
  %s8 = ssub.s32 1, %s6
  %s9 = scalar_select 0, %s8, %s6
  $region1: #{tpu_custom_call.1} parent=0
    #allocation2 [shape = 'u8[131072]{0}', space=vmem, size = 0x20000, scoped, tag = 'input window, operand 0']
    #allocation3 [shape = 's32[2]{0}', space=sflag, size = 0x8, scoped, tag = 'scoped memory for tpu_custom_call.1']
    #allocation4 [shape = 's32[2]{0}', space=sflag, size = 0x8, scoped, tag = 'scoped memory for tpu_custom_call.1']
    #allocation5 [shape = 'u8[131072]{0}', space=vmem, size = 0x20000, scoped, tag = 'output window, operand 0']
    %10 = vsyncpa [#allocation3], 0
    %s11 = scalar_lea.sflag [#allocation3], 1
    %12 = vsyncpa %s11, 0
    %13 = vsyncpa [#allocation4], 0
    %s14 = scalar_lea.sflag [#allocation4], 1
    %15 = vsyncpa %s14, 0
    loop: start=0, step=1, limit=4
    $region2: #{tpu_custom_call.1} parent=1 // loop_pre_header
      _
    $region3: #{tpu_custom_call.1} parent=1 // loop_header
      %s17 = sphi 0, %s21
      %p18 = scmp.ge.s32.totalorder %s17, 4
      %s27 = sphi 0, %s29
      %s30 = sphi 0, %s27
      %s31 = sphi 0, %s30
      %s47 = sphi 0, %s31
      %s51 = sphi 0, %s51
      %s53 = sphi 0, %s51
      %s54 = sphi 0, %s53
      %s68 = sphi 0, %s54
      %s72 = sphi 0, %s72
      %s74 = sphi 0, %s72
      %s75 = sphi 0, %s74
      %s89 = sphi 0, %s75
      %s93 = sphi 0, %s93
      %s95 = sphi 0, %s93
      %s96 = sphi 0, %s95
      %s110 = sphi 0, %s96
      %s114 = sphi 0, %s114
      %s116 = sphi 0, %s114
      %s117 = sphi 0, %s116
      %s131 = sphi 0, %s117
      %s137 = sphi 0, %s139
      %s140 = sphi 0, %s137
      %s141 = sphi 0, %s140
      %s157 = sphi 0, %s141
    $region4: #{tpu_custom_call.1} parent=1 // loop_header_branch
      %20 = sbr.rel (%p18) target = $region8
    $region5: #{tpu_custom_call.1} parent=1 // loop_body
      %s22 = ssub.s32 %s17, 1
      %s23 = ssub.s32 %s17, 2
      %s24 = sadd.s32 %s17, 1
      %s25 = ssub.s32 %s17, %s24
      %p26 = scmp.eq.s32.totalorder %s25, 0
      %s28 = sadd.s32 %s27, 1
      %s29 = scalar_select %p26, %s27, %s28
      %p32 = pneg %p26
      %p33 = scmp.eq.s32.totalorder %s17, 1
      %p34 = por %p32, %p33
      %p35 = scmp.ne.s32.totalorder %s27, %s30
      %p36 = scmp.eq.s32.totalorder %s17, 0
      %p37 = por %p35, %p36
      %p38 = scmp.ne.s32.totalorder %s27, %s30
      %p39 = scmp.eq.s32.totalorder %s22, 1
      %p40 = por %p38, %p39
      %p41 = scmp.ne.s32.totalorder %s30, %s31
      %p42 = scmp.eq.s32.totalorder %s22, 0
      %p43 = por %p41, %p42
      %p44 = scmp.ne.s32.totalorder %s30, %s31
      %p45 = scmp.eq.s32.totalorder %s23, 1
      %p46 = por %p44, %p45
      %p48 = scmp.ne.s32.totalorder %s31, %s47
      %p49 = scmp.eq.s32.totalorder %s23, 0
      %p50 = por %p48, %p49
      %s52 = sadd.s32 %s51, 1
      %p55 = scmp.eq.s32.totalorder %s17, 1
      %p56 = scmp.ne.s32.totalorder %s51, %s53
      %p57 = scmp.eq.s32.totalorder %s17, 0
      %p58 = por %p56, %p57
      %p59 = scmp.ne.s32.totalorder %s51, %s53
      %p60 = scmp.eq.s32.totalorder %s22, 1
      %p61 = por %p59, %p60
      %p62 = scmp.ne.s32.totalorder %s53, %s54
      %p63 = scmp.eq.s32.totalorder %s22, 0
      %p64 = por %p62, %p63
      %p65 = scmp.ne.s32.totalorder %s53, %s54
      %p66 = scmp.eq.s32.totalorder %s23, 1
      %p67 = por %p65, %p66
      %p69 = scmp.ne.s32.totalorder %s54, %s68
      %p70 = scmp.eq.s32.totalorder %s23, 0
      %p71 = por %p69, %p70
      %s73 = sadd.s32 %s72, 1
      %p76 = scmp.eq.s32.totalorder %s17, 1
      %p77 = scmp.ne.s32.totalorder %s72, %s74
      %p78 = scmp.eq.s32.totalorder %s17, 0
      %p79 = por %p77, %p78
      %p80 = scmp.ne.s32.totalorder %s72, %s74
      %p81 = scmp.eq.s32.totalorder %s22, 1
      %p82 = por %p80, %p81
      %p83 = scmp.ne.s32.totalorder %s74, %s75
      %p84 = scmp.eq.s32.totalorder %s22, 0
      %p85 = por %p83, %p84
      %p86 = scmp.ne.s32.totalorder %s74, %s75
      %p87 = scmp.eq.s32.totalorder %s23, 1
      %p88 = por %p86, %p87
      %p90 = scmp.ne.s32.totalorder %s75, %s89
      %p91 = scmp.eq.s32.totalorder %s23, 0
      %p92 = por %p90, %p91
      %s94 = sadd.s32 %s93, 1
      %p97 = scmp.eq.s32.totalorder %s17, 1
      %p98 = scmp.ne.s32.totalorder %s93, %s95
      %p99 = scmp.eq.s32.totalorder %s17, 0
      %p100 = por %p98, %p99
      %p101 = scmp.ne.s32.totalorder %s93, %s95
      %p102 = scmp.eq.s32.totalorder %s22, 1
      %p103 = por %p101, %p102
      %p104 = scmp.ne.s32.totalorder %s95, %s96
      %p105 = scmp.eq.s32.totalorder %s22, 0
      %p106 = por %p104, %p105
      %p107 = scmp.ne.s32.totalorder %s95, %s96
      %p108 = scmp.eq.s32.totalorder %s23, 1
      %p109 = por %p107, %p108
      %p111 = scmp.ne.s32.totalorder %s96, %s110
      %p112 = scmp.eq.s32.totalorder %s23, 0
      %p113 = por %p111, %p112
      %s115 = sadd.s32 %s114, 1
      %p118 = scmp.eq.s32.totalorder %s17, 1
      %p119 = scmp.ne.s32.totalorder %s114, %s116
      %p120 = scmp.eq.s32.totalorder %s17, 0
      %p121 = por %p119, %p120
      %p122 = scmp.ne.s32.totalorder %s114, %s116
      %p123 = scmp.eq.s32.totalorder %s22, 1
      %p124 = por %p122, %p123
      %p125 = scmp.ne.s32.totalorder %s116, %s117
      %p126 = scmp.eq.s32.totalorder %s22, 0
      %p127 = por %p125, %p126
      %p128 = scmp.ne.s32.totalorder %s116, %s117
      %p129 = scmp.eq.s32.totalorder %s23, 1
      %p130 = por %p128, %p129
      %p132 = scmp.ne.s32.totalorder %s117, %s131
      %p133 = scmp.eq.s32.totalorder %s23, 0
      %p134 = por %p132, %p133
      %s135 = ssub.s32 %s17, %s24
      %p136 = scmp.eq.s32.totalorder %s135, 0
      %s138 = sadd.s32 %s137, 1
      %s139 = scalar_select %p136, %s137, %s138
      %p142 = pneg %p136
      %p143 = scmp.eq.s32.totalorder %s17, 1
      %p144 = por %p142, %p143
      %p145 = scmp.ne.s32.totalorder %s137, %s140
      %p146 = scmp.eq.s32.totalorder %s17, 0
      %p147 = por %p145, %p146
      %p148 = scmp.ne.s32.totalorder %s137, %s140
      %p149 = scmp.eq.s32.totalorder %s22, 1
      %p150 = por %p148, %p149
      %p151 = scmp.ne.s32.totalorder %s140, %s141
      %p152 = scmp.eq.s32.totalorder %s22, 0
      %p153 = por %p151, %p152
      %p154 = scmp.ne.s32.totalorder %s140, %s141
      %p155 = scmp.eq.s32.totalorder %s23, 1
      %p156 = por %p154, %p155
      %p158 = scmp.ne.s32.totalorder %s141, %s157
      %p159 = scmp.eq.s32.totalorder %s23, 0
      %p160 = por %p158, %p159
      %p161 = scmp.le.s32.totalorder 1, %s17
      %p162 = scmp.lt.s32.totalorder %s17, 3
      %p163 = pnand %p161, %p162
      %p164 = pneg %p163
      // Predicated region
      $region9: #{tpu_custom_call.1} parent=5 // pred_check
        _
      $region10: #{tpu_custom_call.1} parent=5 // pred_check_branch
        %166 = sbr.rel (%p163) target = $region12
      $region11: #{tpu_custom_call.1} parent=5 // pred_region
        %s167 = ssub.s32 %s17, 1
        // Predicated region
        $region13: #{tpu_custom_call.1} parent=11 // pred_check
          %p168 = pneg %p64
        $region14: #{tpu_custom_call.1} parent=11 // pred_check_branch
          %170 = sbr.rel (%p168) target = $region16
        $region15: #{tpu_custom_call.1} parent=11 // pred_region
          _
        $region16: #{tpu_custom_call.1} parent=11 // pred_fallthru
          _
        // Predicated region
        $region17: #{tpu_custom_call.1} parent=11 // pred_check
          %p171 = pneg %p85
        $region18: #{tpu_custom_call.1} parent=11 // pred_check_branch
          %173 = sbr.rel (%p171) target = $region20
        $region19: #{tpu_custom_call.1} parent=11 // pred_region
          _
        $region20: #{tpu_custom_call.1} parent=11 // pred_fallthru
          _
        // Predicated region
        $region21: #{tpu_custom_call.1} parent=11 // pred_check
          %p174 = pneg %p106
        $region22: #{tpu_custom_call.1} parent=11 // pred_check_branch
          %176 = sbr.rel (%p174) target = $region24
        $region23: #{tpu_custom_call.1} parent=11 // pred_region
          _
        $region24: #{tpu_custom_call.1} parent=11 // pred_fallthru
          _
        // Predicated region
        $region25: #{tpu_custom_call.1} parent=11 // pred_check
          %p177 = pneg %p127
        $region26: #{tpu_custom_call.1} parent=11 // pred_check_branch
          %179 = sbr.rel (%p177) target = $region28
        $region27: #{tpu_custom_call.1} parent=11 // pred_region
          _
        $region28: #{tpu_custom_call.1} parent=11 // pred_fallthru
          _
      $region12: #{tpu_custom_call.1} parent=5 // pred_fallthru
        _
      %p180 = scmp.lt.s32.totalorder %s17, 2
      // Predicated region
      $region29: #{tpu_custom_call.1} parent=5 // pred_check
        %p181 = pneg %p180
      $region30: #{tpu_custom_call.1} parent=5 // pred_check_branch
        %183 = sbr.rel (%p181) target = $region32
      $region31: #{tpu_custom_call.1} parent=5 // pred_region
        // Predicated region
        $region33: #{tpu_custom_call.1} parent=31 // pred_check
          %p184 = pneg %p37
        $region34: #{tpu_custom_call.1} parent=31 // pred_check_branch
          %186 = sbr.rel (%p184) target = $region36
        $region35: #{tpu_custom_call.1} parent=31 // pred_region
          %s187 = sand.u32 %s27, 1
          %s188 = scalar_lea.sflag [#allocation3], %s187
          %s189 = sand.u32 %s27, 1
          %s190 = smul.addr %s189, 128
          %s191 = scalar_lea.vmem [#allocation2], %s190
          %s193 = ssub.s32 2048, 2048
          %194 = vsyncadd %s188, %s193
          %s195 = smul.addr %s17, 16
          %s196 = smul.addr %s195, 128
          %s197 = scalar_lea.hbm %s0, %s196
          %s198 = sshll.u32 %s191, 4
          %s199 = int_to_ptr.vmem [resolvable:$true] %s198
          %204 = dma.hbm_to_vmem [thread:$0]  %s197, 2048, %s199, %s188, 256, 256, 16
        $region36: #{tpu_custom_call.1} parent=31 // pred_fallthru
          _
      $region32: #{tpu_custom_call.1} parent=5 // pred_fallthru
        _
      %p205 = scmp.le.s32.totalorder 1, %s17
      %p206 = scmp.lt.s32.totalorder %s17, 3
      %p207 = pnand %p205, %p206
      %p208 = pneg %p207
      // Predicated region
      $region37: #{tpu_custom_call.1} parent=5 // pred_check
        _
      $region38: #{tpu_custom_call.1} parent=5 // pred_check_branch
        %210 = sbr.rel (%p207) target = $region40
      $region39: #{tpu_custom_call.1} parent=5 // pred_region
        %s211 = ssub.s32 %s17, 1
        %s212 = sand.u32 %s30, 1
        %s213 = scalar_lea.sflag [#allocation3], %s212
        %s214 = sand.u32 %s30, 1
        %s215 = smul.addr %s214, 128
        %s216 = scalar_lea.vmem [#allocation2], %s215
        // Predicated region
        $region41: #{tpu_custom_call.1} parent=39 // pred_check
          %p217 = pneg %p43
        $region42: #{tpu_custom_call.1} parent=39 // pred_check_branch
          %219 = sbr.rel (%p217) target = $region44
        $region43: #{tpu_custom_call.1} parent=39 // pred_region
          %220 = dma.done %s213, 2048
        $region44: #{tpu_custom_call.1} parent=39 // pred_fallthru
          _
        %s221 = sand.u32 %s30, 1
        %s222 = scalar_lea.sflag [#allocation3], %s221
        %s223 = sand.u32 %s30, 1
        %s224 = smul.addr %s223, 128
        %s225 = scalar_lea.vmem [#allocation2], %s224
        %p226 = pneg %p43
        %p227 = pneg %p40
        %p228 = pneg %p64
        %p229 = pneg %p61
        %p230 = pneg %p85
        %p231 = pneg %p82
        %p232 = pneg %p106
        %p233 = pneg %p103
        %p234 = pneg %p127
        %p235 = pneg %p124
        %p236 = pneg %p153
        %p237 = pneg %p150
        %s238 = sand.u32 %s140, 1
        %s239 = scalar_lea.sflag [#allocation4], %s238
        %s240 = sand.u32 %s140, 1
        %s241 = smul.addr %s240, 128
        %s242 = scalar_lea.vmem [#allocation5], %s241
        %v243 = vld [vmem:[%s216] sm:$0xff]
        %v244 = vld [vmem:[%s216 + $0x8] sm:$0xff]
        %v245 = vld [vmem:[%s216 + $0x10] sm:$0xff]
        %v246 = vld [vmem:[%s216 + $0x18] sm:$0xff]
        %v247 = vld [vmem:[%s216 + $0x20] sm:$0xff]
        %v248 = vld [vmem:[%s216 + $0x28] sm:$0xff]
        %v249 = vld [vmem:[%s216 + $0x30] sm:$0xff]
        %v250 = vld [vmem:[%s216 + $0x38] sm:$0xff]
        %v251 = vld [vmem:[%s216 + $0x40] sm:$0xff]
        %v252 = vld [vmem:[%s216 + $0x48] sm:$0xff]
        %v253 = vld [vmem:[%s216 + $0x50] sm:$0xff]
        %v254 = vld [vmem:[%s216 + $0x58] sm:$0xff]
        %v255 = vld [vmem:[%s216 + $0x60] sm:$0xff]
        %v256 = vld [vmem:[%s216 + $0x68] sm:$0xff]
        %v257 = vld [vmem:[%s216 + $0x70] sm:$0xff]
        %v258 = vld [vmem:[%s216 + $0x78] sm:$0xff]
        %v259 = vadd.f32 %v243, %v244
        %260 = vadd.xlane.f32.xlu0 %v259
        %v261 = vpop.xlane.xlu0 %260
        %v262 = vadd.f32 %v245, %v246
        %263 = vadd.xlane.f32.xlu0 %v262
        %v264 = vpop.xlane.xlu0 %263
        %v265 = vadd.f32 %v247, %v248
        %266 = vadd.xlane.f32.xlu0 %v265
        %v267 = vpop.xlane.xlu0 %266
        %v268 = vadd.f32 %v249, %v250
        %269 = vadd.xlane.f32.xlu0 %v268
        %v270 = vpop.xlane.xlu0 %269
        %v271 = vadd.f32 %v251, %v252
        %272 = vadd.xlane.f32.xlu0 %v271
        %v273 = vpop.xlane.xlu0 %272
        %v274 = vadd.f32 %v253, %v254
        %275 = vadd.xlane.f32.xlu0 %v274
        %v276 = vpop.xlane.xlu0 %275
        %v277 = vadd.f32 %v255, %v256
        %278 = vadd.xlane.f32.xlu0 %v277
        %v279 = vpop.xlane.xlu0 %278
        %v280 = vadd.f32 %v257, %v258
        %281 = vadd.xlane.f32.xlu0 %v280
        %v282 = vpop.xlane.xlu0 %281
        %v283 = vmax.f32 %v243, %v244
        %284 = vmax.xlane.f32.xlu0 %v283
        %v285 = vpop.xlane.xlu0 %284
        %v286 = vmax.f32 %v245, %v246
        %287 = vmax.xlane.f32.xlu0 %v286
        %v288 = vpop.xlane.xlu0 %287
        %v289 = vmax.f32 %v247, %v248
        %290 = vmax.xlane.f32.xlu0 %v289
        %v291 = vpop.xlane.xlu0 %290
        %v292 = vmax.f32 %v249, %v250
        %293 = vmax.xlane.f32.xlu0 %v292
        %v294 = vpop.xlane.xlu0 %293
        %v295 = vmax.f32 %v251, %v252
        %296 = vmax.xlane.f32.xlu0 %v295
        %v297 = vpop.xlane.xlu0 %296
        %v298 = vmax.f32 %v253, %v254
        %299 = vmax.xlane.f32.xlu0 %v298
        %v300 = vpop.xlane.xlu0 %299
        %v301 = vmax.f32 %v255, %v256
        %302 = vmax.xlane.f32.xlu0 %v301
        %v303 = vpop.xlane.xlu0 %302
        %v304 = vmax.f32 %v257, %v258
        %305 = vmax.xlane.f32.xlu0 %v304
        %v306 = vpop.xlane.xlu0 %305
        %v307 = vmul.f32 %v261, 0.00390625
        %v308 = vmul.f32 %v264, 0.00390625
        %v309 = vmul.f32 %v267, 0.00390625
        %v310 = vmul.f32 %v270, 0.00390625
        %v311 = vmul.f32 %v273, 0.00390625
        %v312 = vmul.f32 %v276, 0.00390625
        %v313 = vmul.f32 %v279, 0.00390625
        %v314 = vmul.f32 %v282, 0.00390625
        %v323 = vlaneseq
        %v324 = vand.u32 %v323, 127
        %v325 = vlaneseq
        %v326 = vshrl.u32 %v325, 7
        %v327 = vsub.s32 %v324, %v326
        %v328 = vrot.slane %v307, %v327
        %v329 = vadd.s32 %v324, 4294967288
        %v330 = vlaneseq
        %v331 = vshrl.u32 %v330, 7
        %v332 = vsub.s32 %v329, %v331
        %v333 = vrot.slane %v308, %v332
        %vm334 = vcmask 130112
        %v335 = vsel %vm334, %v333, %v328
        %v336 = vadd.s32 %v324, 4294967280
        %v337 = vlaneseq
        %v338 = vshrl.u32 %v337, 7
        %v339 = vsub.s32 %v336, %v338
        %v340 = vrot.slane %v309, %v339
        %vm341 = vcmask 195712
        %v342 = vsel %vm341, %v340, %v335
        %v343 = vadd.s32 %v324, 4294967272
        %v344 = vlaneseq
        %v345 = vshrl.u32 %v344, 7
        %v346 = vsub.s32 %v343, %v345
        %v347 = vrot.slane %v310, %v346
        %vm348 = vcmask 261312
        %v349 = vsel %vm348, %v347, %v342
        %v350 = vadd.s32 %v324, 4294967264
        %v351 = vlaneseq
        %v352 = vshrl.u32 %v351, 7
        %v353 = vsub.s32 %v350, %v352
        %v354 = vrot.slane %v311, %v353
        %vm355 = vcmask 326912
        %v356 = vsel %vm355, %v354, %v349
        %v357 = vadd.s32 %v324, 4294967256
        %v358 = vlaneseq
        %v359 = vshrl.u32 %v358, 7
        %v360 = vsub.s32 %v357, %v359
        %v361 = vrot.slane %v312, %v360
        %vm362 = vcmask 392512
        %v363 = vsel %vm362, %v361, %v356
        %v364 = vadd.s32 %v324, 4294967248
        %v365 = vlaneseq
        %v366 = vshrl.u32 %v365, 7
        %v367 = vsub.s32 %v364, %v366
        %v368 = vrot.slane %v313, %v367
        %vm369 = vcmask 458112
        %v370 = vsel %vm369, %v368, %v363
        %v371 = vadd.s32 %v324, 4294967240
        %v372 = vlaneseq
        %v373 = vshrl.u32 %v372, 7
        %v374 = vsub.s32 %v371, %v373
        %v375 = vrot.slane %v314, %v374
        %vm376 = vcmask 523712
        %v377 = vsel %vm376, %v375, %v370
        %vm379 = vcmask 1040384
        %v380 = vsel %vm379, %v377, 0.0
        %v389 = vlaneseq
        %v390 = vshrl.u32 %v389, 7
        %v391 = vsub.s32 %v324, %v390
        %v392 = vrot.slane %v285, %v391
        %v393 = vlaneseq
        %v394 = vshrl.u32 %v393, 7
        %v395 = vsub.s32 %v329, %v394
        %v396 = vrot.slane %v288, %v395
        %v397 = vsel %vm334, %v396, %v392
        %v398 = vlaneseq
        %v399 = vshrl.u32 %v398, 7
        %v400 = vsub.s32 %v336, %v399
        %v401 = vrot.slane %v291, %v400
        %v402 = vsel %vm341, %v401, %v397
        %v403 = vlaneseq
        %v404 = vshrl.u32 %v403, 7
        %v405 = vsub.s32 %v343, %v404
        %v406 = vrot.slane %v294, %v405
        %v407 = vsel %vm348, %v406, %v402
        %v408 = vlaneseq
        %v409 = vshrl.u32 %v408, 7
        %v410 = vsub.s32 %v350, %v409
        %v411 = vrot.slane %v297, %v410
        %v412 = vsel %vm355, %v411, %v407
        %v413 = vlaneseq
        %v414 = vshrl.u32 %v413, 7
        %v415 = vsub.s32 %v357, %v414
        %v416 = vrot.slane %v300, %v415
        %v417 = vsel %vm362, %v416, %v412
        %v418 = vlaneseq
        %v419 = vshrl.u32 %v418, 7
        %v420 = vsub.s32 %v364, %v419
        %v421 = vrot.slane %v303, %v420
        %v422 = vsel %vm369, %v421, %v417
        %v423 = vlaneseq
        %v424 = vshrl.u32 %v423, 7
        %v425 = vsub.s32 %v371, %v424
        %v426 = vrot.slane %v306, %v425
        %v427 = vsel %vm376, %v426, %v422
        %v429 = vsel %vm379, %v427, 0.0
        %v430 = vld [vmem:[%s1] sm:$0xff]
        %v431 = vld [vmem:[%s1 + $0x8] sm:$0xff]
        %v432 = vld [vmem:[%s1 + $0x10] sm:$0xff]
        %v433 = vld [vmem:[%s1 + $0x18] sm:$0xff]
        %v434 = vld [vmem:[%s1 + $0x20] sm:$0xff]
        %v435 = vld [vmem:[%s1 + $0x28] sm:$0xff]
        %v436 = vld [vmem:[%s1 + $0x30] sm:$0xff]
        %v437 = vld [vmem:[%s1 + $0x38] sm:$0xff]
        %v438 = vld [vmem:[%s2] sm:$0x1]
        %v440 = vlaneseq
        %v441 = vshrl.u32 %v440, 7
        %v442 = vsub.s32 0, %v441
        %v443 = vrot.slane %v438, %v442
        %vm445 = vcmask 523264
        %v447 = vsel %vm445, %v380, 0
        %v450 = vsel %vm445, %v429, 0
        %452 = vmatprep.subr.mxu0 0.0
        %453 = vmatpush1.msra.mxu0 %v430
        %454 = vmatprep.subr.mxu0 0.0
        %455 = vmatpush1.msra.mxu0 %v431
        %456 = vmatprep.subr.mxu0 0.0
        %457 = vmatpush1.msra.mxu0 %v432
        %458 = vmatprep.subr.mxu0 0.0
        %459 = vmatpush1.msra.mxu0 %v433
        %460 = vmatprep.subr.mxu0 0.0
        %461 = vmatpush1.msra.mxu0 %v434
        %462 = vmatprep.subr.mxu0 0.0
        %463 = vmatpush1.msra.mxu0 %v435
        %464 = vmatprep.subr.mxu0 0.0
        %465 = vmatpush1.msra.mxu0 %v436
        %466 = vmatprep.subr.mxu0 0.0
        %467 = vmatpush1.msra.mxu0 %v437
        %468 = vmatprep.subr.mxu0 0.0
        %469 = vmatpush1.msra.mxu0 0.0
        %470 = vmatprep.subr.mxu0 0.0
        %471 = vmatpush1.msra.mxu0 0.0
        %472 = vmatprep.subr.mxu0 0.0
        %473 = vmatpush1.msra.mxu0 0.0
        %474 = vmatprep.subr.mxu0 0.0
        %475 = vmatpush1.msra.mxu0 0.0
        %476 = vmatprep.subr.mxu0 0.0
        %477 = vmatpush1.msra.mxu0 0.0
        %478 = vmatprep.subr.mxu0 0.0
        %479 = vmatpush1.msra.mxu0 0.0
        %480 = vmatprep.subr.mxu0 0.0
        %481 = vmatpush1.msra.mxu0 0.0
        %482 = vmatprep.subr.mxu0 0.0
        %483 = vmatpush1.msra.mxu0 0.0
        %484 = vmatprep.subr.mxu0 0.0
        %485 = vmatpush1.msra.mxu0 0.0
        %486 = vmatprep.subr.mxu0 0.0
        %487 = vmatpush1.msra.mxu0 0.0
        %488 = vmatprep.subr.mxu0 0.0
        %489 = vmatpush1.msra.mxu0 0.0
        %490 = vmatprep.subr.mxu0 0.0
        %491 = vmatpush1.msra.mxu0 0.0
        %492 = vmatprep.subr.mxu0 0.0
        %493 = vmatpush1.msra.mxu0 0.0
        %494 = vmatprep.subr.mxu0 0.0
        %495 = vmatpush1.msra.mxu0 0.0
        %496 = vmatprep.subr.mxu0 0.0
        %497 = vmatpush1.msra.mxu0 0.0
        %498 = vmatprep.subr.mxu0 0.0
        %499 = vmatpush1.msra.mxu0 0.0
        %500 = vmatprep.subr.mxu0 0.0
        %501 = vmatpush1.msra.mxu0 0.0
        %502 = vmatprep.subr.mxu0 0.0
        %503 = vmatpush1.msra.mxu0 0.0
        %504 = vmatprep.subr.mxu0 0.0
        %505 = vmatpush1.msra.mxu0 0.0
        %506 = vmatprep.subr.mxu0 0.0
        %507 = vmatpush1.msra.mxu0 0.0
        %508 = vmatprep.subr.mxu0 0.0
        %509 = vmatpush1.msra.mxu0 0.0
        %510 = vmatprep.subr.mxu0 0.0
        %511 = vmatpush1.msra.mxu0 0.0
        %512 = vmatprep.subr.mxu0 0.0
        %513 = vmatpush1.msra.mxu0 0.0
        %514 = vmatprep.subr.mxu0 0.0
        %515 = vmatpush1.msra.mxu0 0.0
        %516 = vmatprep.mubr.f32.mxu0 0.0
        %517 = vmatmul.mubr.f32.gmra.mrb[0].mxu0 %v447
        %v518 = vpop.f32.mrb[0].mxu0
        %v519 = vadd.f32 %v443, %v518
        %v520 = vpop.f32.mrb[0].mxu0
        %521 = vmatprep.mubr.f32.mxu0 0.0
        %522 = vmatmul.mubr.f32.gmra.mrb[0].mxu0 %v450
        %v523 = vpop.f32.mrb[0].mxu0
        %v524 = vadd.f32 %v443, %v523
        %v525 = vpop.f32.mrb[0].mxu0
        %526 = vdwg.mxu0
        %v527 = vmax.f32 %v519, 0.0
        %v528 = vmax.f32 %v524, 0.0
        %v529 = vld [vmem:[%s3] sm:$0xf]
        %v530 = vld [vmem:[%s4] sm:$0x1]
        %v532 = vlaneseq
        %v533 = vshrl.u32 %v532, 7
        %v534 = vsub.s32 0, %v533
        %v535 = vrot.slane %v530, %v534
        %vm537 = vcmask 31744
        %v539 = vsel %vm537, %v527, 0
        %v542 = vsel %vm537, %v528, 0
        %vm544 = vcmask 1043456
        %v546 = vsel %vm544, %v529, 0
        %548 = vmatprep.subr.mxu0 0.0
        %549 = vmatpush1.msra.mxu0 %v546
        %550 = vmatprep.subr.mxu0 0.0
        %551 = vmatpush1.msra.mxu0 0.0
        %552 = vmatprep.subr.mxu0 0.0
        %553 = vmatpush1.msra.mxu0 0.0
        %554 = vmatprep.subr.mxu0 0.0
        %555 = vmatpush1.msra.mxu0 0.0
        %556 = vmatprep.subr.mxu0 0.0
        %557 = vmatpush1.msra.mxu0 0.0
        %558 = vmatprep.subr.mxu0 0.0
        %559 = vmatpush1.msra.mxu0 0.0
        %560 = vmatprep.subr.mxu0 0.0
        %561 = vmatpush1.msra.mxu0 0.0
        %562 = vmatprep.subr.mxu0 0.0
        %563 = vmatpush1.msra.mxu0 0.0
        %564 = vmatprep.subr.mxu0 0.0
        %565 = vmatpush1.msra.mxu0 0.0
        %566 = vmatprep.subr.mxu0 0.0
        %567 = vmatpush1.msra.mxu0 0.0
        %568 = vmatprep.subr.mxu0 0.0
        %569 = vmatpush1.msra.mxu0 0.0
        %570 = vmatprep.subr.mxu0 0.0
        %571 = vmatpush1.msra.mxu0 0.0
        %572 = vmatprep.subr.mxu0 0.0
        %573 = vmatpush1.msra.mxu0 0.0
        %574 = vmatprep.subr.mxu0 0.0
        %575 = vmatpush1.msra.mxu0 0.0
        %576 = vmatprep.subr.mxu0 0.0
        %577 = vmatpush1.msra.mxu0 0.0
        %578 = vmatprep.subr.mxu0 0.0
        %579 = vmatpush1.msra.mxu0 0.0
        %580 = vmatprep.subr.mxu0 0.0
        %581 = vmatpush1.msra.mxu0 0.0
        %582 = vmatprep.subr.mxu0 0.0
        %583 = vmatpush1.msra.mxu0 0.0
        %584 = vmatprep.subr.mxu0 0.0
        %585 = vmatpush1.msra.mxu0 0.0
        %586 = vmatprep.subr.mxu0 0.0
        %587 = vmatpush1.msra.mxu0 0.0
        %588 = vmatprep.subr.mxu0 0.0
        %589 = vmatpush1.msra.mxu0 0.0
        %590 = vmatprep.subr.mxu0 0.0
        %591 = vmatpush1.msra.mxu0 0.0
        %592 = vmatprep.subr.mxu0 0.0
        %593 = vmatpush1.msra.mxu0 0.0
        %594 = vmatprep.subr.mxu0 0.0
        %595 = vmatpush1.msra.mxu0 0.0
        %596 = vmatprep.subr.mxu0 0.0
        %597 = vmatpush1.msra.mxu0 0.0
        %598 = vmatprep.subr.mxu0 0.0
        %599 = vmatpush1.msra.mxu0 0.0
        %600 = vmatprep.subr.mxu0 0.0
        %601 = vmatpush1.msra.mxu0 0.0
        %602 = vmatprep.subr.mxu0 0.0
        %603 = vmatpush1.msra.mxu0 0.0
        %604 = vmatprep.subr.mxu0 0.0
        %605 = vmatpush1.msra.mxu0 0.0
        %606 = vmatprep.subr.mxu0 0.0
        %607 = vmatpush1.msra.mxu0 0.0
        %608 = vmatprep.subr.mxu0 0.0
        %609 = vmatpush1.msra.mxu0 0.0
        %610 = vmatprep.subr.mxu0 0.0
        %611 = vmatpush1.msra.mxu0 0.0
        %612 = vmatprep.mubr.f32.mxu0 0.0
        %613 = vmatmul.mubr.f32.gmra.mrb[0].mxu0 %v539
        %v614 = vpop.f32.mrb[0].mxu0
        %v615 = vadd.f32 %v535, %v614
        %v616 = vpop.f32.mrb[0].mxu0
        %617 = vmatprep.mubr.f32.mxu0 0.0
        %618 = vmatmul.mubr.f32.gmra.mrb[0].mxu0 %v542
        %v619 = vpop.f32.mrb[0].mxu0
        %v620 = vadd.f32 %v535, %v619
        %v621 = vpop.f32.mrb[0].mxu0
        %622 = vdwg.mxu0
        %v623 = vadd.f32 %v615, %v620
        %v624 = vxor.u32 %v623, 2147483648
        %v625 = vmul.f32 %v624, 1.442695
        %v626 = vpow.pop %v625
        %v627 = vadd.f32 %v626, 1.0
        %v628 = vrcp.pop %v627
        %v629 = vmul.f32 1.0, %v628
        %v630 = vlaneseq
        %v631 = vshrl.u32 %v630, 7
        %v632 = vsub.s32 0, %v631
        %v633 = vrot.slane %v629, %v632
        %635 = vbcast.lane.b32.xlu0 %v633, 256
        %v636 = vpop.permute.xlu0 %635
        %s638 = sor.u32 256, 8
        %639 = vbcast.lane.b32.xlu0 %v633, %s638
        %v640 = vpop.permute.xlu0 %639
        %s642 = sor.u32 256, 16
        %643 = vbcast.lane.b32.xlu0 %v633, %s642
        %v644 = vpop.permute.xlu0 %643
        %s646 = sor.u32 256, 24
        %647 = vbcast.lane.b32.xlu0 %v633, %s646
        %v648 = vpop.permute.xlu0 %647
        %s650 = sor.u32 256, 32
        %651 = vbcast.lane.b32.xlu0 %v633, %s650
        %v652 = vpop.permute.xlu0 %651
        %s654 = sor.u32 256, 40
        %655 = vbcast.lane.b32.xlu0 %v633, %s654
        %v656 = vpop.permute.xlu0 %655
        %s658 = sor.u32 256, 48
        %659 = vbcast.lane.b32.xlu0 %v633, %s658
        %v660 = vpop.permute.xlu0 %659
        %s662 = sor.u32 256, 56
        %663 = vbcast.lane.b32.xlu0 %v633, %s662
        %v664 = vpop.permute.xlu0 %663
        %v665 = vmul.f32 %v243, %v636
        %v666 = vmul.f32 %v244, %v636
        %v667 = vmul.f32 %v245, %v640
        %v668 = vmul.f32 %v246, %v640
        %v669 = vmul.f32 %v247, %v644
        %v670 = vmul.f32 %v248, %v644
        %v671 = vmul.f32 %v249, %v648
        %v672 = vmul.f32 %v250, %v648
        %v673 = vmul.f32 %v251, %v652
        %v674 = vmul.f32 %v252, %v652
        %v675 = vmul.f32 %v253, %v656
        %v676 = vmul.f32 %v254, %v656
        %v677 = vmul.f32 %v255, %v660
        %v678 = vmul.f32 %v256, %v660
        %v679 = vmul.f32 %v257, %v664
        %v680 = vmul.f32 %v258, %v664
        %681 = vst [vmem:[%s242] sm:$0xff] %v665
        %682 = vst [vmem:[%s242 + $0x8] sm:$0xff] %v666
        %683 = vst [vmem:[%s242 + $0x10] sm:$0xff] %v667
        %684 = vst [vmem:[%s242 + $0x18] sm:$0xff] %v668
        %685 = vst [vmem:[%s242 + $0x20] sm:$0xff] %v669
        %686 = vst [vmem:[%s242 + $0x28] sm:$0xff] %v670
        %687 = vst [vmem:[%s242 + $0x30] sm:$0xff] %v671
        %688 = vst [vmem:[%s242 + $0x38] sm:$0xff] %v672
        %689 = vst [vmem:[%s242 + $0x40] sm:$0xff] %v673
        %690 = vst [vmem:[%s242 + $0x48] sm:$0xff] %v674
        %691 = vst [vmem:[%s242 + $0x50] sm:$0xff] %v675
        %692 = vst [vmem:[%s242 + $0x58] sm:$0xff] %v676
        %693 = vst [vmem:[%s242 + $0x60] sm:$0xff] %v677
        %694 = vst [vmem:[%s242 + $0x68] sm:$0xff] %v678
        %695 = vst [vmem:[%s242 + $0x70] sm:$0xff] %v679
        %696 = vst [vmem:[%s242 + $0x78] sm:$0xff] %v680
        %s697 = sand.u32 %s140, 1
        %s698 = scalar_lea.sflag [#allocation4], %s697
        %s699 = sand.u32 %s140, 1
        %s700 = smul.addr %s699, 128
        %s701 = scalar_lea.vmem [#allocation5], %s700
        // Predicated region
        $region45: #{tpu_custom_call.1} parent=39 // pred_check
          %p702 = pneg %p150
        $region46: #{tpu_custom_call.1} parent=39 // pred_check_branch
          %704 = sbr.rel (%p702) target = $region48
        $region47: #{tpu_custom_call.1} parent=39 // pred_region
          %s706 = ssub.s32 2048, 2048
          %707 = vsyncadd %s698, %s706
          %s708 = smul.addr %s22, 16
          %s709 = smul.addr %s708, 128
          %s710 = scalar_lea.hbm %s5, %s709
          %s711 = sshll.u32 %s701, 4
          %s712 = int_to_ptr.vmem [resolvable:$true] %s711
          %717 = dma.vmem_to_hbm [thread:$0]  %s712, 2048, %s710, %s698, 256, 256, 16
        $region48: #{tpu_custom_call.1} parent=39 // pred_fallthru
          _
      $region40: #{tpu_custom_call.1} parent=5 // pred_fallthru
        _
      %p718 = scmp.le.s32.totalorder 2, %s17
      // Predicated region
      $region49: #{tpu_custom_call.1} parent=5 // pred_check
        %p719 = pneg %p718
      $region50: #{tpu_custom_call.1} parent=5 // pred_check_branch
        %721 = sbr.rel (%p719) target = $region52
      $region51: #{tpu_custom_call.1} parent=5 // pred_region
        %s722 = ssub.s32 %s17, 2
        // Predicated region
        $region53: #{tpu_custom_call.1} parent=51 // pred_check
          %p723 = pneg %p156
        $region54: #{tpu_custom_call.1} parent=51 // pred_check_branch
          %725 = sbr.rel (%p723) target = $region56
        $region55: #{tpu_custom_call.1} parent=51 // pred_region
          %s726 = sand.u32 %s141, 1
          %s727 = scalar_lea.sflag [#allocation4], %s726
          %s728 = sand.u32 %s141, 1
          %s729 = smul.addr %s728, 128
          %s730 = scalar_lea.vmem [#allocation5], %s729
          %731 = dma.done %s727, 2048
        $region56: #{tpu_custom_call.1} parent=51 // pred_fallthru
          _
      $region52: #{tpu_custom_call.1} parent=5 // pred_fallthru
        _
    $region6: #{tpu_custom_call.1} parent=1 // loop_footer
      %s21 = sadd.s32 1, %s17
    $region7: #{tpu_custom_call.1} parent=1 // loop_footer_branch
      %16 = sbr.rel target = $region3
    $region8: #{tpu_custom_call.1} parent=1 // loop_exit
      _
    %732 = vsyncpa [#allocation3], 1
    %s733 = scalar_lea.sflag [#allocation3], 1
    %734 = vsyncpa %s733, 1
    %735 = vsyncpa [#allocation4], 1
    %s736 = scalar_lea.sflag [#allocation4], 1
    %737 = vsyncpa %s736, 1

</llo_original>
